<compile_context>
chip_gen: v6e
topology: v6e:2x2x1
jax: 0.10.0
libtpu: 0.0.40
codegen_flags: <defaults>
</compile_context>

<pallas_src>
import jax
import jax.numpy as jnp
from jax.experimental import pallas as pl
from jax.experimental.pallas import tpu as pltpu


def generate_square_coordinates_2(canvas_size, square_size, pattern):
    coordinates = []
    y_offset = (canvas_size[1] - len(pattern) * square_size) // (len(pattern) + 1)
    current_y = y_offset
    for row in pattern:
        if row == 0:
            current_y += square_size + y_offset
            continue
        x_offset = (canvas_size[0] - row * square_size) // (row + 1)
        current_x = x_offset
        for _ in range(row):
            coordinates.append((current_x, current_y))
            current_x += square_size + x_offset
        current_y += square_size + y_offset
    return coordinates


def _make_readout_kernel(coords, square_size, num_lanes):
    """coords: static tuple of (row, col) top-left corners; fully unrolled."""

    def kernel(x_ref, o_ref):
        # x_ref: (1, H, W) f32 image block for one batch element.
        # o_ref: (1, 1, num_lanes) f32 lane-dense output block.
        lane = jax.lax.broadcasted_iota(jnp.int32, (1, 1, num_lanes), 2)
        acc = jnp.zeros((1, 1, num_lanes), jnp.float32)
        for d, (rx, ry) in enumerate(coords):
            # Static windowed reduction on the VPU/XLU (MXU stays idle — it
            # would be <1% utilized at M=1, N=10 anyway).
            window = x_ref[0, rx:rx + square_size, ry:ry + square_size]
            s = jnp.sum(window)
            acc = acc + jnp.where(lane == d, s, jnp.float32(0.0))
        o_ref[...] = acc

    return kernel


class BasicModelPallas:
    _NUM_LANES = 128  # lane-dense output block width

    def __init__(self, phase_dim, whole_dim, square_size=40):
        canvas_size = (phase_dim, phase_dim)
        self.square_size = square_size
        pattern = [3, 4, 3]
        square_coordinates = generate_square_coordinates_2(
            canvas_size, self.square_size, pattern)
        ordered_coordinates = [*square_coordinates[0:3],
                               *square_coordinates[3:7],
                               *square_coordinates[7:10]]
        pad = (whole_dim - phase_dim) // 2
        self.phase_dim = phase_dim
        self.whole_dim = whole_dim
        # Identical attribute semantics to the PyTorch module.
        self.det_x = [coord[1] for coord in ordered_coordinates]
        self.det_y = [coord[0] for coord in ordered_coordinates]
        self.det_y_loc = [coord[0] + pad for coord in ordered_coordinates]
        self.det_x_loc = [coord[1] + pad for coord in ordered_coordinates]
        self.num_det = len(ordered_coordinates)

        # Detector squares must lie fully inside the padded frame (otherwise
        # the windowed sum would silently clip, like torch slicing would).
        for rx, ry in zip(self.det_x_loc, self.det_y_loc):
            assert 0 <= rx and rx + square_size <= whole_dim, (rx, square_size)
            assert 0 <= ry and ry + square_size <= whole_dim, (ry, square_size)

        # Static (row, col) corners baked into the kernel (no mask tensor).
        self._coords = tuple(zip(self.det_x_loc, self.det_y_loc))
        self._kernel = _make_readout_kernel(
            self._coords, self.square_size, self._NUM_LANES)
        self._readout = jax.jit(self._readout_impl)

    def forward(self):
        # Exact semantics of the reference: forward() is a no-op.
        # TODO(synk): reference forward() is `pass`; the detector readout below
        # is the natural compute implied by the init coordinates, not forward().
        return None

    def _readout_impl(self, x):
        # x: (B, whole_dim, whole_dim) intensity image.
        x = x.astype(jnp.float32)
        B, H, W = x.shape
        assert H == self.whole_dim and W == self.whole_dim

        bytes_accessed = B * H * W * 4 + B * self._NUM_LANES * 4
        flops = B * self.num_det * self.square_size * self.square_size

        out = pl.pallas_call(
            self._kernel,
            out_shape=jax.ShapeDtypeStruct((B, 1, self._NUM_LANES), jnp.float32),
            grid=(B,),
            in_specs=[
                pl.BlockSpec((1, H, W), lambda b: (b, 0, 0)),
            ],
            out_specs=pl.BlockSpec((1, 1, self._NUM_LANES), lambda b: (b, 0, 0)),
            compiler_params=pltpu.CompilerParams(
                dimension_semantics=("parallel",)),
            cost_estimate=pl.CostEstimate(
                flops=flops, transcendentals=0, bytes_accessed=bytes_accessed),
        )(x)
        # Lane-dense (B, 128) block from the kernel; keep only the real dets.
        return out[:, 0, :self.num_det]

    def detector_readout(self, x):
        return self._readout(x)


if __name__ == "__main__":
    # Small shapes consistent with the module: phase_dim canvas holding a
    # [3, 4, 3] pattern of square_size squares, padded to whole_dim.
    phase_dim, whole_dim, square_size, batch = 64, 96, 8, 2

    model = BasicModelPallas(phase_dim, whole_dim, square_size=square_size)

    # forward() mirrors the PyTorch module exactly (no-op).
    assert model.forward() is None

    key = jax.random.PRNGKey(0)
    x = jax.random.uniform(key, (batch, whole_dim, whole_dim), dtype=jnp.float32)

    out = model.detector_readout(x)
    out = jax.block_until_ready(out)

    # Sanity check against a plain-JAX reference of the detector readout.
    ref = jnp.stack(
        [x[:, rx:rx + square_size, ry:ry + square_size].sum(axis=(1, 2))
         for rx, ry in zip(model.det_x_loc, model.det_y_loc)],
        axis=-1)
    assert out.shape == (batch, model.num_det)
    assert jnp.allclose(out, ref, rtol=1e-5, atol=1e-4)

    print("KERNEL_OK")
</pallas_src>

<mosaic_0001>
module attributes {stable_mosaic.version = 11 : i64} {
  func.func @kernel(%arg0: i32, %arg1: memref<1x96x96xf32, #tpu.memory_space<vmem>>, %arg2: memref<1x1x128xf32, #tpu.memory_space<vmem>>) attributes {dimension_semantics = [#tpu.dimension_semantics<parallel>], iteration_bounds = array<i64: 2>, scalar_prefetch = 0 : i64, scratch_operands = 0 : i64, tpu.core_type = #tpu.core_type<tc>, window_params = [{transform_indices = @transform_0, window_bounds = array<i64: 1, 96, 96>}, {transform_indices = @transform_1, window_bounds = array<i64: 1, 1, 128>}]} {
    %0 = tpu.iota {dimensions = array<i32: 2>} : vector<1x1x128xi32>
    %cst = arith.constant 0.000000e+00 : f32
    %1 = vector.broadcast %cst : f32 to vector<1x1x128xf32>
    %c0 = arith.constant 0 : index
    %c26 = arith.constant 26 : index
    %c26_0 = arith.constant 26 : index
    %2 = vector.load %arg1[%c0, %c26, %c26_0] : memref<1x96x96xf32, #tpu.memory_space<vmem>>, vector<1x8x8xf32>
    %3 = vector.shape_cast %2 : vector<1x8x8xf32> to vector<8x8xf32>
    %4 = vector.shape_cast %3 : vector<8x8xf32> to vector<1x8x8xf32>
    %cst_1 = arith.constant dense<0.000000e+00> : vector<1xf32>
    %5 = vector.multi_reduction <add>, %4, %cst_1 [1, 2] : vector<1x8x8xf32> to vector<1xf32>
    %6 = vector.shape_cast %5 : vector<1xf32> to vector<1x1x1xf32>
    %7 = vector.extract %6[0, 0, 0] : f32 from vector<1x1x1xf32>
    %c0_i32 = arith.constant 0 : i32
    %8 = vector.broadcast %c0_i32 : i32 to vector<1x1x128xi32>
    %9 = arith.cmpi eq, %0, %8 : vector<1x1x128xi32>
    %cst_2 = arith.constant 0.000000e+00 : f32
    %10 = vector.broadcast %7 : f32 to vector<1x1x128xf32>
    %11 = vector.broadcast %cst_2 : f32 to vector<1x1x128xf32>
    %12 = arith.select %9, %10, %11 : vector<1x1x128xi1>, vector<1x1x128xf32>
    %13 = arith.addf %1, %12 : vector<1x1x128xf32>
    %c0_3 = arith.constant 0 : index
    %c26_4 = arith.constant 26 : index
    %c44 = arith.constant 44 : index
    %14 = vector.load %arg1[%c0_3, %c26_4, %c44] : memref<1x96x96xf32, #tpu.memory_space<vmem>>, vector<1x8x8xf32>
    %15 = vector.shape_cast %14 : vector<1x8x8xf32> to vector<8x8xf32>
    %16 = vector.shape_cast %15 : vector<8x8xf32> to vector<1x8x8xf32>
    %cst_5 = arith.constant dense<0.000000e+00> : vector<1xf32>
    %17 = vector.multi_reduction <add>, %16, %cst_5 [1, 2] : vector<1x8x8xf32> to vector<1xf32>
    %18 = vector.shape_cast %17 : vector<1xf32> to vector<1x1x1xf32>
    %19 = vector.extract %18[0, 0, 0] : f32 from vector<1x1x1xf32>
    %c1_i32 = arith.constant 1 : i32
    %20 = vector.broadcast %c1_i32 : i32 to vector<1x1x128xi32>
    %21 = arith.cmpi eq, %0, %20 : vector<1x1x128xi32>
    %cst_6 = arith.constant 0.000000e+00 : f32
    %22 = vector.broadcast %19 : f32 to vector<1x1x128xf32>
    %23 = vector.broadcast %cst_6 : f32 to vector<1x1x128xf32>
    %24 = arith.select %21, %22, %23 : vector<1x1x128xi1>, vector<1x1x128xf32>
    %25 = arith.addf %13, %24 : vector<1x1x128xf32>
    %c0_7 = arith.constant 0 : index
    %c26_8 = arith.constant 26 : index
    %c62 = arith.constant 62 : index
    %26 = vector.load %arg1[%c0_7, %c26_8, %c62] : memref<1x96x96xf32, #tpu.memory_space<vmem>>, vector<1x8x8xf32>
    %27 = vector.shape_cast %26 : vector<1x8x8xf32> to vector<8x8xf32>
    %28 = vector.shape_cast %27 : vector<8x8xf32> to vector<1x8x8xf32>
    %cst_9 = arith.constant dense<0.000000e+00> : vector<1xf32>
    %29 = vector.multi_reduction <add>, %28, %cst_9 [1, 2] : vector<1x8x8xf32> to vector<1xf32>
    %30 = vector.shape_cast %29 : vector<1xf32> to vector<1x1x1xf32>
    %31 = vector.extract %30[0, 0, 0] : f32 from vector<1x1x1xf32>
    %c2_i32 = arith.constant 2 : i32
    %32 = vector.broadcast %c2_i32 : i32 to vector<1x1x128xi32>
    %33 = arith.cmpi eq, %0, %32 : vector<1x1x128xi32>
    %cst_10 = arith.constant 0.000000e+00 : f32
    %34 = vector.broadcast %31 : f32 to vector<1x1x128xf32>
    %35 = vector.broadcast %cst_10 : f32 to vector<1x1x128xf32>
    %36 = arith.select %33, %34, %35 : vector<1x1x128xi1>, vector<1x1x128xf32>
    %37 = arith.addf %25, %36 : vector<1x1x128xf32>
    %c0_11 = arith.constant 0 : index
    %c44_12 = arith.constant 44 : index
    %c22 = arith.constant 22 : index
    %38 = vector.load %arg1[%c0_11, %c44_12, %c22] : memref<1x96x96xf32, #tpu.memory_space<vmem>>, vector<1x8x8xf32>
    %39 = vector.shape_cast %38 : vector<1x8x8xf32> to vector<8x8xf32>
    %40 = vector.shape_cast %39 : vector<8x8xf32> to vector<1x8x8xf32>
    %cst_13 = arith.constant dense<0.000000e+00> : vector<1xf32>
    %41 = vector.multi_reduction <add>, %40, %cst_13 [1, 2] : vector<1x8x8xf32> to vector<1xf32>
    %42 = vector.shape_cast %41 : vector<1xf32> to vector<1x1x1xf32>
    %43 = vector.extract %42[0, 0, 0] : f32 from vector<1x1x1xf32>
    %c3_i32 = arith.constant 3 : i32
    %44 = vector.broadcast %c3_i32 : i32 to vector<1x1x128xi32>
    %45 = arith.cmpi eq, %0, %44 : vector<1x1x128xi32>
    %cst_14 = arith.constant 0.000000e+00 : f32
    %46 = vector.broadcast %43 : f32 to vector<1x1x128xf32>
    %47 = vector.broadcast %cst_14 : f32 to vector<1x1x128xf32>
    %48 = arith.select %45, %46, %47 : vector<1x1x128xi1>, vector<1x1x128xf32>
    %49 = arith.addf %37, %48 : vector<1x1x128xf32>
    %c0_15 = arith.constant 0 : index
    %c44_16 = arith.constant 44 : index
    %c36 = arith.constant 36 : index
    %50 = vector.load %arg1[%c0_15, %c44_16, %c36] : memref<1x96x96xf32, #tpu.memory_space<vmem>>, vector<1x8x8xf32>
    %51 = vector.shape_cast %50 : vector<1x8x8xf32> to vector<8x8xf32>
    %52 = vector.shape_cast %51 : vector<8x8xf32> to vector<1x8x8xf32>
    %cst_17 = arith.constant dense<0.000000e+00> : vector<1xf32>
    %53 = vector.multi_reduction <add>, %52, %cst_17 [1, 2] : vector<1x8x8xf32> to vector<1xf32>
    %54 = vector.shape_cast %53 : vector<1xf32> to vector<1x1x1xf32>
    %55 = vector.extract %54[0, 0, 0] : f32 from vector<1x1x1xf32>
    %c4_i32 = arith.constant 4 : i32
    %56 = vector.broadcast %c4_i32 : i32 to vector<1x1x128xi32>
    %57 = arith.cmpi eq, %0, %56 : vector<1x1x128xi32>
    %cst_18 = arith.constant 0.000000e+00 : f32
    %58 = vector.broadcast %55 : f32 to vector<1x1x128xf32>
    %59 = vector.broadcast %cst_18 : f32 to vector<1x1x128xf32>
    %60 = arith.select %57, %58, %59 : vector<1x1x128xi1>, vector<1x1x128xf32>
    %61 = arith.addf %49, %60 : vector<1x1x128xf32>
    %c0_19 = arith.constant 0 : index
    %c44_20 = arith.constant 44 : index
    %c50 = arith.constant 50 : index
    %62 = vector.load %arg1[%c0_19, %c44_20, %c50] : memref<1x96x96xf32, #tpu.memory_space<vmem>>, vector<1x8x8xf32>
    %63 = vector.shape_cast %62 : vector<1x8x8xf32> to vector<8x8xf32>
    %64 = vector.shape_cast %63 : vector<8x8xf32> to vector<1x8x8xf32>
    %cst_21 = arith.constant dense<0.000000e+00> : vector<1xf32>
    %65 = vector.multi_reduction <add>, %64, %cst_21 [1, 2] : vector<1x8x8xf32> to vector<1xf32>
    %66 = vector.shape_cast %65 : vector<1xf32> to vector<1x1x1xf32>
    %67 = vector.extract %66[0, 0, 0] : f32 from vector<1x1x1xf32>
    %c5_i32 = arith.constant 5 : i32
    %68 = vector.broadcast %c5_i32 : i32 to vector<1x1x128xi32>
    %69 = arith.cmpi eq, %0, %68 : vector<1x1x128xi32>
    %cst_22 = arith.constant 0.000000e+00 : f32
    %70 = vector.broadcast %67 : f32 to vector<1x1x128xf32>
    %71 = vector.broadcast %cst_22 : f32 to vector<1x1x128xf32>
    %72 = arith.select %69, %70, %71 : vector<1x1x128xi1>, vector<1x1x128xf32>
    %73 = arith.addf %61, %72 : vector<1x1x128xf32>
    %c0_23 = arith.constant 0 : index
    %c44_24 = arith.constant 44 : index
    %c64 = arith.constant 64 : index
    %74 = vector.load %arg1[%c0_23, %c44_24, %c64] : memref<1x96x96xf32, #tpu.memory_space<vmem>>, vector<1x8x8xf32>
    %75 = vector.shape_cast %74 : vector<1x8x8xf32> to vector<8x8xf32>
    %76 = vector.shape_cast %75 : vector<8x8xf32> to vector<1x8x8xf32>
    %cst_25 = arith.constant dense<0.000000e+00> : vector<1xf32>
    %77 = vector.multi_reduction <add>, %76, %cst_25 [1, 2] : vector<1x8x8xf32> to vector<1xf32>
    %78 = vector.shape_cast %77 : vector<1xf32> to vector<1x1x1xf32>
    %79 = vector.extract %78[0, 0, 0] : f32 from vector<1x1x1xf32>
    %c6_i32 = arith.constant 6 : i32
    %80 = vector.broadcast %c6_i32 : i32 to vector<1x1x128xi32>
    %81 = arith.cmpi eq, %0, %80 : vector<1x1x128xi32>
    %cst_26 = arith.constant 0.000000e+00 : f32
    %82 = vector.broadcast %79 : f32 to vector<1x1x128xf32>
    %83 = vector.broadcast %cst_26 : f32 to vector<1x1x128xf32>
    %84 = arith.select %81, %82, %83 : vector<1x1x128xi1>, vector<1x1x128xf32>
    %85 = arith.addf %73, %84 : vector<1x1x128xf32>
    %c0_27 = arith.constant 0 : index
    %c62_28 = arith.constant 62 : index
    %c26_29 = arith.constant 26 : index
    %86 = vector.load %arg1[%c0_27, %c62_28, %c26_29] : memref<1x96x96xf32, #tpu.memory_space<vmem>>, vector<1x8x8xf32>
    %87 = vector.shape_cast %86 : vector<1x8x8xf32> to vector<8x8xf32>
    %88 = vector.shape_cast %87 : vector<8x8xf32> to vector<1x8x8xf32>
    %cst_30 = arith.constant dense<0.000000e+00> : vector<1xf32>
    %89 = vector.multi_reduction <add>, %88, %cst_30 [1, 2] : vector<1x8x8xf32> to vector<1xf32>
    %90 = vector.shape_cast %89 : vector<1xf32> to vector<1x1x1xf32>
    %91 = vector.extract %90[0, 0, 0] : f32 from vector<1x1x1xf32>
    %c7_i32 = arith.constant 7 : i32
    %92 = vector.broadcast %c7_i32 : i32 to vector<1x1x128xi32>
    %93 = arith.cmpi eq, %0, %92 : vector<1x1x128xi32>
    %cst_31 = arith.constant 0.000000e+00 : f32
    %94 = vector.broadcast %91 : f32 to vector<1x1x128xf32>
    %95 = vector.broadcast %cst_31 : f32 to vector<1x1x128xf32>
    %96 = arith.select %93, %94, %95 : vector<1x1x128xi1>, vector<1x1x128xf32>
    %97 = arith.addf %85, %96 : vector<1x1x128xf32>
    %c0_32 = arith.constant 0 : index
    %c62_33 = arith.constant 62 : index
    %c44_34 = arith.constant 44 : index
    %98 = vector.load %arg1[%c0_32, %c62_33, %c44_34] : memref<1x96x96xf32, #tpu.memory_space<vmem>>, vector<1x8x8xf32>
    %99 = vector.shape_cast %98 : vector<1x8x8xf32> to vector<8x8xf32>
    %100 = vector.shape_cast %99 : vector<8x8xf32> to vector<1x8x8xf32>
    %cst_35 = arith.constant dense<0.000000e+00> : vector<1xf32>
    %101 = vector.multi_reduction <add>, %100, %cst_35 [1, 2] : vector<1x8x8xf32> to vector<1xf32>
    %102 = vector.shape_cast %101 : vector<1xf32> to vector<1x1x1xf32>
    %103 = vector.extract %102[0, 0, 0] : f32 from vector<1x1x1xf32>
    %c8_i32 = arith.constant 8 : i32
    %104 = vector.broadcast %c8_i32 : i32 to vector<1x1x128xi32>
    %105 = arith.cmpi eq, %0, %104 : vector<1x1x128xi32>
    %cst_36 = arith.constant 0.000000e+00 : f32
    %106 = vector.broadcast %103 : f32 to vector<1x1x128xf32>
    %107 = vector.broadcast %cst_36 : f32 to vector<1x1x128xf32>
    %108 = arith.select %105, %106, %107 : vector<1x1x128xi1>, vector<1x1x128xf32>
    %109 = arith.addf %97, %108 : vector<1x1x128xf32>
    %c0_37 = arith.constant 0 : index
    %c62_38 = arith.constant 62 : index
    %c62_39 = arith.constant 62 : index
    %110 = vector.load %arg1[%c0_37, %c62_38, %c62_39] : memref<1x96x96xf32, #tpu.memory_space<vmem>>, vector<1x8x8xf32>
    %111 = vector.shape_cast %110 : vector<1x8x8xf32> to vector<8x8xf32>
    %112 = vector.shape_cast %111 : vector<8x8xf32> to vector<1x8x8xf32>
    %cst_40 = arith.constant dense<0.000000e+00> : vector<1xf32>
    %113 = vector.multi_reduction <add>, %112, %cst_40 [1, 2] : vector<1x8x8xf32> to vector<1xf32>
    %114 = vector.shape_cast %113 : vector<1xf32> to vector<1x1x1xf32>
    %115 = vector.extract %114[0, 0, 0] : f32 from vector<1x1x1xf32>
    %c9_i32 = arith.constant 9 : i32
    %116 = vector.broadcast %c9_i32 : i32 to vector<1x1x128xi32>
    %117 = arith.cmpi eq, %0, %116 : vector<1x1x128xi32>
    %cst_41 = arith.constant 0.000000e+00 : f32
    %118 = vector.broadcast %115 : f32 to vector<1x1x128xf32>
    %119 = vector.broadcast %cst_41 : f32 to vector<1x1x128xf32>
    %120 = arith.select %117, %118, %119 : vector<1x1x128xi1>, vector<1x1x128xf32>
    %121 = arith.addf %109, %120 : vector<1x1x128xf32>
    %c0_42 = arith.constant 0 : index
    %c0_43 = arith.constant 0 : index
    %c0_44 = arith.constant 0 : index
    %122 = vector.load %arg2[%c0_42, %c0_43, %c0_44] : memref<1x1x128xf32, #tpu.memory_space<vmem>>, vector<1x1x128xf32>
    tpu.vector_store %arg2[%c0_42, %c0_43, %c0_44], %121 {strides = array<i32>} : memref<1x1x128xf32, #tpu.memory_space<vmem>>, vector<1x1x128xf32>,
    return
  }
  func.func @transform_0(%arg0: i32) -> (i32, i32, i32) {
    %c0_i32 = arith.constant 0 : i32
    %c0_i32_0 = arith.constant 0 : i32
    %c0_i32_1 = arith.constant 0 : i32
    return %arg0, %c0_i32, %c0_i32_0 : i32, i32, i32
  }
  func.func @transform_1(%arg0: i32) -> (i32, i32, i32) {
    %c0_i32 = arith.constant 0 : i32
    %c0_i32_0 = arith.constant 0 : i32
    %c0_i32_1 = arith.constant 0 : i32
    return %arg0, %c0_i32, %c0_i32_0 : i32, i32, i32
  }
}

</mosaic_0001>

<llo_original>
// kernel: _readout_impl.1
$region0: #{_readout_impl.1}
  #allocation0 [shape = 'u32[]', space=smem, size = 0x4, offset = 0x4, fixed_abs, tag = 'smem constant byte address 0x4 - core index']
  #allocation1 [shape = 'u32[144,128]{1,0:T(1,128)}', space=vmem, size = 0x12000, scoped, tag = 'internal scratch']
  %s0 = inlined_call_operand.hbm [shape: f32[2,96,96], index: 0, kind: input, shape index: {}]
  %s1 = inlined_call_operand.hbm [shape: f32[2,1,128], index: 1, kind: output, shape index: {}]
  %s2 = sld [smem:[#allocation0]]
  $region41: #{_readout_impl.1} parent=0
    _
  %s4 = ssub.s32 1, %s2
  %s5 = scalar_select 0, %s4, %s2
  $region1: #{_readout_impl.1} parent=0
    #allocation2 [shape = 'u8[98304]{0}', space=vmem, size = 0x18000, scoped, tag = 'input window, operand 0']
    #allocation3 [shape = 's32[2]{0}', space=sflag, size = 0x8, scoped, tag = 'scoped memory for _readout_impl.1']
    #allocation4 [shape = 's32[2]{0}', space=sflag, size = 0x8, scoped, tag = 'scoped memory for _readout_impl.1']
    #allocation5 [shape = 'u8[1024]{0}', space=vmem, size = 0x400, scoped, tag = 'output window, operand 0']
    %6 = vsyncpa [#allocation3], 0
    %s7 = scalar_lea.sflag [#allocation3], 1
    %8 = vsyncpa %s7, 0
    %9 = vsyncpa [#allocation4], 0
    %s10 = scalar_lea.sflag [#allocation4], 1
    %11 = vsyncpa %s10, 0
    loop: start=0, step=1, limit=4
    $region2: #{_readout_impl.1} parent=1 // loop_pre_header
      _
    $region3: #{_readout_impl.1} parent=1 // loop_header
      %s13 = sphi 0, %s17
      %p14 = scmp.ge.s32.totalorder %s13, 4
      %s23 = sphi 0, %s25
      %s26 = sphi 0, %s23
      %s27 = sphi 0, %s26
      %s43 = sphi 0, %s27
      %s49 = sphi 0, %s51
      %s52 = sphi 0, %s49
      %s53 = sphi 0, %s52
      %s69 = sphi 0, %s53
    $region4: #{_readout_impl.1} parent=1 // loop_header_branch
      %16 = sbr.rel (%p14) target = $region8
    $region5: #{_readout_impl.1} parent=1 // loop_body
      %s18 = ssub.s32 %s13, 1
      %s19 = ssub.s32 %s13, 2
      %s20 = sadd.s32 %s13, 1
      %s21 = ssub.s32 %s13, %s20
      %p22 = scmp.eq.s32.totalorder %s21, 0
      %s24 = sadd.s32 %s23, 1
      %s25 = scalar_select %p22, %s23, %s24
      %p28 = pneg %p22
      %p29 = scmp.eq.s32.totalorder %s13, 1
      %p30 = por %p28, %p29
      %p31 = scmp.ne.s32.totalorder %s23, %s26
      %p32 = scmp.eq.s32.totalorder %s13, 0
      %p33 = por %p31, %p32
      %p34 = scmp.ne.s32.totalorder %s23, %s26
      %p35 = scmp.eq.s32.totalorder %s18, 1
      %p36 = por %p34, %p35
      %p37 = scmp.ne.s32.totalorder %s26, %s27
      %p38 = scmp.eq.s32.totalorder %s18, 0
      %p39 = por %p37, %p38
      %p40 = scmp.ne.s32.totalorder %s26, %s27
      %p41 = scmp.eq.s32.totalorder %s19, 1
      %p42 = por %p40, %p41
      %p44 = scmp.ne.s32.totalorder %s27, %s43
      %p45 = scmp.eq.s32.totalorder %s19, 0
      %p46 = por %p44, %p45
      %s47 = ssub.s32 %s13, %s20
      %p48 = scmp.eq.s32.totalorder %s47, 0
      %s50 = sadd.s32 %s49, 1
      %s51 = scalar_select %p48, %s49, %s50
      %p54 = pneg %p48
      %p55 = scmp.eq.s32.totalorder %s13, 1
      %p56 = por %p54, %p55
      %p57 = scmp.ne.s32.totalorder %s49, %s52
      %p58 = scmp.eq.s32.totalorder %s13, 0
      %p59 = por %p57, %p58
      %p60 = scmp.ne.s32.totalorder %s49, %s52
      %p61 = scmp.eq.s32.totalorder %s18, 1
      %p62 = por %p60, %p61
      %p63 = scmp.ne.s32.totalorder %s52, %s53
      %p64 = scmp.eq.s32.totalorder %s18, 0
      %p65 = por %p63, %p64
      %p66 = scmp.ne.s32.totalorder %s52, %s53
      %p67 = scmp.eq.s32.totalorder %s19, 1
      %p68 = por %p66, %p67
      %p70 = scmp.ne.s32.totalorder %s53, %s69
      %p71 = scmp.eq.s32.totalorder %s19, 0
      %p72 = por %p70, %p71
      %p73 = scmp.le.s32.totalorder 1, %s13
      %p74 = scmp.lt.s32.totalorder %s13, 3
      %p75 = pnand %p73, %p74
      %p76 = pneg %p75
      // Predicated region
      $region9: #{_readout_impl.1} parent=5 // pred_check
        _
      $region10: #{_readout_impl.1} parent=5 // pred_check_branch
        %78 = sbr.rel (%p75) target = $region12
      $region11: #{_readout_impl.1} parent=5 // pred_region
        %s79 = ssub.s32 %s13, 1
      $region12: #{_readout_impl.1} parent=5 // pred_fallthru
        _
      %p80 = scmp.lt.s32.totalorder %s13, 2
      // Predicated region
      $region13: #{_readout_impl.1} parent=5 // pred_check
        %p81 = pneg %p80
      $region14: #{_readout_impl.1} parent=5 // pred_check_branch
        %83 = sbr.rel (%p81) target = $region16
      $region15: #{_readout_impl.1} parent=5 // pred_region
        // Predicated region
        $region17: #{_readout_impl.1} parent=15 // pred_check
          %p84 = pneg %p33
        $region18: #{_readout_impl.1} parent=15 // pred_check_branch
          %86 = sbr.rel (%p84) target = $region20
        $region19: #{_readout_impl.1} parent=15 // pred_region
          %s87 = sand.u32 %s23, 1
          %s88 = scalar_lea.sflag [#allocation3], %s87
          %s89 = sand.u32 %s23, 1
          %s90 = smul.addr %s89, 96
          %s91 = scalar_lea.vmem [#allocation2], %s90
          %s93 = ssub.s32 1536, 1536
          %94 = vsyncadd %s88, %s93
          %s95 = smul.addr %s13, 12
          %s96 = smul.addr %s95, 128
          %s97 = scalar_lea.hbm %s0, %s96
          %s98 = sshll.u32 %s91, 4
          %s99 = int_to_ptr.vmem [resolvable:$true] %s98
          %104 = dma.hbm_to_vmem [thread:$0]  %s97, 1536, %s99, %s88, 128, 128, 8
        $region20: #{_readout_impl.1} parent=15 // pred_fallthru
          _
      $region16: #{_readout_impl.1} parent=5 // pred_fallthru
        _
      %p105 = scmp.le.s32.totalorder 1, %s13
      %p106 = scmp.lt.s32.totalorder %s13, 3
      %p107 = pnand %p105, %p106
      %p108 = pneg %p107
      // Predicated region
      $region21: #{_readout_impl.1} parent=5 // pred_check
        _
      $region22: #{_readout_impl.1} parent=5 // pred_check_branch
        %110 = sbr.rel (%p107) target = $region24
      $region23: #{_readout_impl.1} parent=5 // pred_region
        %s111 = ssub.s32 %s13, 1
        %s112 = sand.u32 %s26, 1
        %s113 = scalar_lea.sflag [#allocation3], %s112
        %s114 = sand.u32 %s26, 1
        %s115 = smul.addr %s114, 96
        %s116 = scalar_lea.vmem [#allocation2], %s115
        // Predicated region
        $region25: #{_readout_impl.1} parent=23 // pred_check
          %p117 = pneg %p39
        $region26: #{_readout_impl.1} parent=23 // pred_check_branch
          %119 = sbr.rel (%p117) target = $region28
        $region27: #{_readout_impl.1} parent=23 // pred_region
          %120 = dma.done %s113, 1536
        $region28: #{_readout_impl.1} parent=23 // pred_fallthru
          _
        %s121 = sand.u32 %s26, 1
        %s122 = scalar_lea.sflag [#allocation3], %s121
        %s123 = sand.u32 %s26, 1
        %s124 = smul.addr %s123, 96
        %s125 = scalar_lea.vmem [#allocation2], %s124
        %p126 = pneg %p39
        %p127 = pneg %p36
        %p128 = pneg %p65
        %p129 = pneg %p62
        %s130 = sand.u32 %s52, 1
        %s131 = scalar_lea.sflag [#allocation4], %s130
        %s132 = sand.u32 %s52, 1
        %s133 = scalar_lea.vmem [#allocation5], %s132
        %v134 = vlaneseq
        %v135 = vand.u32 %v134, 127
        %v136 = vld [vmem:[%s116 + $0x1a] sm:$0xff]
        %138 = vrot.lane.b32.xlu0 %v136, 102
        %v139 = vpop.permute.xlu0 %138
        %vm141 = vcmask 64512
        %v142 = vsel %vm141, %v139, 0.0
        %143 = vadd.xlane.f32.xlu0 %v142
        %v144 = vpop.xlane.xlu0 %143
        %v145 = vrot.slane %v144, 4
        %v146 = vadd.f32 %v144, %v145
        %v147 = vrot.slane %v146, 2
        %v148 = vadd.f32 %v146, %v147
        %v149 = vrot.slane %v148, 1
        %v150 = vadd.f32 %v148, %v149
        %s151 = vtos %v150
        %vm152 = vcmp.eq.s32.totalorder %v135, 0
        %v153 = vstv %s151
        %v154 = vsel %vm152, %v153, 0.0
        %v155 = vadd.f32 %v154, 0.0
        %156 = vrot.lane.b32.xlu0 %v136, 84
        %v157 = vpop.permute.xlu0 %156
        %v159 = vsel %vm141, %v157, 0.0
        %160 = vadd.xlane.f32.xlu0 %v159
        %v161 = vpop.xlane.xlu0 %160
        %v162 = vrot.slane %v161, 4
        %v163 = vadd.f32 %v161, %v162
        %v164 = vrot.slane %v163, 2
        %v165 = vadd.f32 %v163, %v164
        %v166 = vrot.slane %v165, 1
        %v167 = vadd.f32 %v165, %v166
        %s168 = vtos %v167
        %vm169 = vcmp.eq.s32.totalorder %v135, 1
        %v170 = vstv %s168
        %v171 = vsel %vm169, %v170, 0.0
        %v172 = vadd.f32 %v155, %v171
        %173 = vrot.lane.b32.xlu0 %v136, 66
        %v174 = vpop.permute.xlu0 %173
        %v176 = vsel %vm141, %v174, 0.0
        %177 = vadd.xlane.f32.xlu0 %v176
        %v178 = vpop.xlane.xlu0 %177
        %v179 = vrot.slane %v178, 4
        %v180 = vadd.f32 %v178, %v179
        %v181 = vrot.slane %v180, 2
        %v182 = vadd.f32 %v180, %v181
        %v183 = vrot.slane %v182, 1
        %v184 = vadd.f32 %v182, %v183
        %s185 = vtos %v184
        %vm186 = vcmp.eq.s32.totalorder %v135, 2
        %v187 = vstv %s185
        %v188 = vsel %vm186, %v187, 0.0
        %v189 = vadd.f32 %v172, %v188
        %v190 = vld [vmem:[%s116 + $0x2c] sm:$0xff]
        %192 = vrot.lane.b32.xlu0 %v190, 106
        %v193 = vpop.permute.xlu0 %192
        %v195 = vsel %vm141, %v193, 0.0
        %196 = vadd.xlane.f32.xlu0 %v195
        %v197 = vpop.xlane.xlu0 %196
        %v198 = vrot.slane %v197, 4
        %v199 = vadd.f32 %v197, %v198
        %v200 = vrot.slane %v199, 2
        %v201 = vadd.f32 %v199, %v200
        %v202 = vrot.slane %v201, 1
        %v203 = vadd.f32 %v201, %v202
        %s204 = vtos %v203
        %vm205 = vcmp.eq.s32.totalorder %v135, 3
        %v206 = vstv %s204
        %v207 = vsel %vm205, %v206, 0.0
        %v208 = vadd.f32 %v189, %v207
        %209 = vrot.lane.b32.xlu0 %v190, 92
        %v210 = vpop.permute.xlu0 %209
        %v212 = vsel %vm141, %v210, 0.0
        %213 = vadd.xlane.f32.xlu0 %v212
        %v214 = vpop.xlane.xlu0 %213
        %v215 = vrot.slane %v214, 4
        %v216 = vadd.f32 %v214, %v215
        %v217 = vrot.slane %v216, 2
        %v218 = vadd.f32 %v216, %v217
        %v219 = vrot.slane %v218, 1
        %v220 = vadd.f32 %v218, %v219
        %s221 = vtos %v220
        %vm222 = vcmp.eq.s32.totalorder %v135, 4
        %v223 = vstv %s221
        %v224 = vsel %vm222, %v223, 0.0
        %v225 = vadd.f32 %v208, %v224
        %226 = vrot.lane.b32.xlu0 %v190, 78
        %v227 = vpop.permute.xlu0 %226
        %v229 = vsel %vm141, %v227, 0.0
        %230 = vadd.xlane.f32.xlu0 %v229
        %v231 = vpop.xlane.xlu0 %230
        %v232 = vrot.slane %v231, 4
        %v233 = vadd.f32 %v231, %v232
        %v234 = vrot.slane %v233, 2
        %v235 = vadd.f32 %v233, %v234
        %v236 = vrot.slane %v235, 1
        %v237 = vadd.f32 %v235, %v236
        %s238 = vtos %v237
        %vm239 = vcmp.eq.s32.totalorder %v135, 5
        %v240 = vstv %s238
        %v241 = vsel %vm239, %v240, 0.0
        %v242 = vadd.f32 %v225, %v241
        %243 = vrot.lane.b32.xlu0 %v190, 64
        %v244 = vpop.permute.xlu0 %243
        %v246 = vsel %vm141, %v244, 0.0
        %247 = vadd.xlane.f32.xlu0 %v246
        %v248 = vpop.xlane.xlu0 %247
        %v249 = vrot.slane %v248, 4
        %v250 = vadd.f32 %v248, %v249
        %v251 = vrot.slane %v250, 2
        %v252 = vadd.f32 %v250, %v251
        %v253 = vrot.slane %v252, 1
        %v254 = vadd.f32 %v252, %v253
        %s255 = vtos %v254
        %vm256 = vcmp.eq.s32.totalorder %v135, 6
        %v257 = vstv %s255
        %v258 = vsel %vm256, %v257, 0.0
        %v259 = vadd.f32 %v242, %v258
        %v260 = vld [vmem:[%s116 + $0x3e] sm:$0xff]
        %262 = vrot.lane.b32.xlu0 %v260, 102
        %v263 = vpop.permute.xlu0 %262
        %v265 = vsel %vm141, %v263, 0.0
        %266 = vadd.xlane.f32.xlu0 %v265
        %v267 = vpop.xlane.xlu0 %266
        %v268 = vrot.slane %v267, 4
        %v269 = vadd.f32 %v267, %v268
        %v270 = vrot.slane %v269, 2
        %v271 = vadd.f32 %v269, %v270
        %v272 = vrot.slane %v271, 1
        %v273 = vadd.f32 %v271, %v272
        %s274 = vtos %v273
        %vm275 = vcmp.eq.s32.totalorder %v135, 7
        %v276 = vstv %s274
        %v277 = vsel %vm275, %v276, 0.0
        %v278 = vadd.f32 %v259, %v277
        %279 = vrot.lane.b32.xlu0 %v260, 84
        %v280 = vpop.permute.xlu0 %279
        %v282 = vsel %vm141, %v280, 0.0
        %283 = vadd.xlane.f32.xlu0 %v282
        %v284 = vpop.xlane.xlu0 %283
        %v285 = vrot.slane %v284, 4
        %v286 = vadd.f32 %v284, %v285
        %v287 = vrot.slane %v286, 2
        %v288 = vadd.f32 %v286, %v287
        %v289 = vrot.slane %v288, 1
        %v290 = vadd.f32 %v288, %v289
        %s291 = vtos %v290
        %vm292 = vcmp.eq.s32.totalorder %v135, 8
        %v293 = vstv %s291
        %v294 = vsel %vm292, %v293, 0.0
        %v295 = vadd.f32 %v278, %v294
        %296 = vrot.lane.b32.xlu0 %v260, 66
        %v297 = vpop.permute.xlu0 %296
        %v299 = vsel %vm141, %v297, 0.0
        %300 = vadd.xlane.f32.xlu0 %v299
        %v301 = vpop.xlane.xlu0 %300
        %v302 = vrot.slane %v301, 4
        %v303 = vadd.f32 %v301, %v302
        %v304 = vrot.slane %v303, 2
        %v305 = vadd.f32 %v303, %v304
        %v306 = vrot.slane %v305, 1
        %v307 = vadd.f32 %v305, %v306
        %s308 = vtos %v307
        %vm309 = vcmp.eq.s32.totalorder %v135, 9
        %v310 = vstv %s308
        %v311 = vsel %vm309, %v310, 0.0
        %v312 = vadd.f32 %v295, %v311
        %313 = vst [vmem:[%s133] sm:$0x1] %v312
        %s314 = sand.u32 %s52, 1
        %s315 = scalar_lea.sflag [#allocation4], %s314
        %s316 = sand.u32 %s52, 1
        %s317 = scalar_lea.vmem [#allocation5], %s316
        // Predicated region
        $region29: #{_readout_impl.1} parent=23 // pred_check
          %p318 = pneg %p62
        $region30: #{_readout_impl.1} parent=23 // pred_check_branch
          %320 = sbr.rel (%p318) target = $region32
        $region31: #{_readout_impl.1} parent=23 // pred_region
          %s322 = ssub.s32 16, 16
          %323 = vsyncadd %s315, %s322
          %s324 = smul.addr %s18, 16
          %s325 = scalar_lea.hbm %s1, %s324
          %s327 = sshll.u32 %s317, 4
          %s328 = int_to_ptr.vmem [resolvable:$true] %s327
          %330 = dma.vmem_to_hbm [thread:$0]  %s328, 16, %s325, %s315
        $region32: #{_readout_impl.1} parent=23 // pred_fallthru
          _
      $region24: #{_readout_impl.1} parent=5 // pred_fallthru
        _
      %p331 = scmp.le.s32.totalorder 2, %s13
      // Predicated region
      $region33: #{_readout_impl.1} parent=5 // pred_check
        %p332 = pneg %p331
      $region34: #{_readout_impl.1} parent=5 // pred_check_branch
        %334 = sbr.rel (%p332) target = $region36
      $region35: #{_readout_impl.1} parent=5 // pred_region
        %s335 = ssub.s32 %s13, 2
        // Predicated region
        $region37: #{_readout_impl.1} parent=35 // pred_check
          %p336 = pneg %p68
        $region38: #{_readout_impl.1} parent=35 // pred_check_branch
          %338 = sbr.rel (%p336) target = $region40
        $region39: #{_readout_impl.1} parent=35 // pred_region
          %s339 = sand.u32 %s53, 1
          %s340 = scalar_lea.sflag [#allocation4], %s339
          %s341 = sand.u32 %s53, 1
          %s342 = scalar_lea.vmem [#allocation5], %s341
          %343 = dma.done %s340, 16
        $region40: #{_readout_impl.1} parent=35 // pred_fallthru
          _
      $region36: #{_readout_impl.1} parent=5 // pred_fallthru
        _
    $region6: #{_readout_impl.1} parent=1 // loop_footer
      %s17 = sadd.s32 1, %s13
    $region7: #{_readout_impl.1} parent=1 // loop_footer_branch
      %12 = sbr.rel target = $region3
    $region8: #{_readout_impl.1} parent=1 // loop_exit
      _
    %344 = vsyncpa [#allocation3], 1
    %s345 = scalar_lea.sflag [#allocation3], 1
    %346 = vsyncpa %s345, 1
    %347 = vsyncpa [#allocation4], 1
    %s348 = scalar_lea.sflag [#allocation4], 1
    %349 = vsyncpa %s348, 1

</llo_original>
